<compile_context>
chip_gen: v5e
topology: v5e:2x2
jax: 0.10.0
libtpu: 0.0.40
codegen_flags: <defaults>
</compile_context>

<pallas_src>
import functools

import jax
import jax.numpy as jnp
from jax.experimental import pallas as pl
from jax.experimental.pallas import tpu as pltpu

_LANE = 128      # lane width (last-dim tile granularity)
_SUBLANE = 8     # f32 sublane granularity (second-to-last dim)

_VMEM_BUDGET = 40 << 20   # conservative tiling budget (fits v7x's 64 MiB physical)
_VMEM_LIMIT = 48 << 20    # explicit scoped-VMEM limit requested from Mosaic


def _round_up(n, m):
    return ((n + m - 1) // m) * m


def _mlp_kernel(x_ref, w1_ref, b1_ref, w2_ref, o_ref):
    # linear1: bf16 x bf16 MXU matmul with f32 accumulation.  The cast is a
    # no-op if the caller already streams x in bf16 (halves x HBM traffic).
    x = x_ref[...].astype(jnp.bfloat16)
    h = jnp.dot(x, w1_ref[...], preferred_element_type=jnp.float32)
    # bias + ReLU in f32 (VPU).
    h = jnp.maximum(h + b1_ref[...], 0.0)
    # linear2 (no bias): keep h in f32 (no re-narrowing); w2 (bf16, resident,
    # tiny) is promoted once per step — negligible for a mem-bound kernel.
    y = jnp.dot(h, w2_ref[...], preferred_element_type=jnp.float32)
    # sigmoid: exp on EUP, approx reciprocal also on EUP -> no VPU divide.
    o_ref[...] = pl.reciprocal(1.0 + jnp.exp(-y), approx=True).astype(o_ref.dtype)


def prepare_params(w1, b1, w2):
    """One-time (call-invariant) weight prep: pad H to 128 lanes, cast to bf16.

    w1:(D_in,H), b1:(H,) or (1,H), w2:(H,D_out) in the (in, out) layout
    (i.e. the transpose of PyTorch's Linear.weight).
    Zero-padded H columns/rows contribute exactly 0 through bias/ReLU/w2, so
    forward semantics are unchanged (up to bf16 weight truncation).
    """
    D_in, H = w1.shape
    D_out = w2.shape[1]
    h_p = _round_up(H, _LANE)
    w1_p = jnp.zeros((D_in, h_p), jnp.bfloat16).at[:, :H].set(w1.astype(jnp.bfloat16))
    b1_p = jnp.zeros((1, h_p), jnp.float32).at[:, :H].set(
        b1.reshape(1, H).astype(jnp.float32))
    w2_p = jnp.zeros((h_p, D_out), jnp.bfloat16).at[:H, :].set(w2.astype(jnp.bfloat16))
    return w1_p, b1_p, w2_p


def _pick_batch_tile(B, D_in, h_p, D_out, x_itemsize, block_b):
    """Largest batch tile that fits the VMEM budget (and lets the grid split)."""
    tb = min(block_b, _round_up(B, _SUBLANE))
    tb = max(_SUBLANE, _round_up(tb, _SUBLANE))
    # Prefer >= 2 grid steps so the "parallel" batch axis can shard across
    # v7x's two TensorCores (a 1-step grid leaves one TC idle).
    if B > 2 * _SUBLANE:
        tb = min(tb, _round_up(-(-B // 2), _SUBLANE))

    def footprint(t):
        x_bytes = 2 * t * D_in * x_itemsize           # double-buffered x tile
        o_bytes = 2 * t * D_out * 4                   # double-buffered out tile (f32)
        h_bytes = t * h_p * 4                         # in-kernel f32 intermediate
        w_bytes = (D_in * h_p + h_p * D_out) * 2 + h_p * 4   # resident bf16 weights + f32 bias
        return x_bytes + o_bytes + h_bytes + w_bytes

    while tb > _SUBLANE and footprint(tb) > _VMEM_BUDGET:
        tb = max(_SUBLANE, _round_up(tb // 2, _SUBLANE))
    # Note: for very wide layers where the resident weights alone exceed the
    # budget (mainly v7x's 64 MiB), an H-tiled grid axis with a VMEM f32
    # accumulator would be needed; not required at these module sizes.
    return tb


@functools.partial(jax.jit, static_argnames=("block_b",))
def jinyu_net_forward(x, w1_p, b1_p, w2_p, *, block_b=1024):
    """x:(B,D_in) f32 or bf16; padded params from prepare_params() -> (B,D_out) f32."""
    B, D_in = x.shape
    h_p = w1_p.shape[1]
    D_out = w2_p.shape[1]

    tb = _pick_batch_tile(B, D_in, h_p, D_out, x.dtype.itemsize, block_b)
    grid = pl.cdiv(B, tb)   # partial last block handled by Pallas masking

    return pl.pallas_call(
        _mlp_kernel,
        out_shape=jax.ShapeDtypeStruct((B, D_out), jnp.float32),
        grid_spec=pltpu.PrefetchScalarGridSpec(
            num_scalar_prefetch=0,
            grid=(grid,),
            in_specs=[
                # x: streamed, unpadded, double-buffered by default.
                pl.BlockSpec((tb, D_in), lambda i: (i, 0)),
                # weights/bias: VMEM-resident across all steps, single buffer.
                pl.BlockSpec((D_in, h_p), lambda i: (0, 0),
                             pipeline_mode=pl.Buffered(1)),
                pl.BlockSpec((1, h_p), lambda i: (0, 0),
                             pipeline_mode=pl.Buffered(1)),
                pl.BlockSpec((h_p, D_out), lambda i: (0, 0),
                             pipeline_mode=pl.Buffered(1)),
            ],
            out_specs=pl.BlockSpec((tb, D_out), lambda i: (i, 0)),
        ),
        compiler_params=pltpu.CompilerParams(
            dimension_semantics=("parallel",),   # independent batch tiles
            vmem_limit_bytes=_VMEM_LIMIT,
        ),
    )(x, w1_p, b1_p, w2_p)


def _reference(x, w1, b1, w2):
    h = jnp.maximum(x @ w1 + b1.reshape(1, -1), 0.0)
    return jax.nn.sigmoid(h @ w2)


if __name__ == "__main__":
    # Small shapes consistent with the module (an MLP on 2-D input).
    D_in, H, D_out = 32, 64, 16

    key = jax.random.PRNGKey(0)
    kx, kw1, kb1, kw2, kx2 = jax.random.split(key, 5)

    # PyTorch Linear stores weight as (out, in); we keep the (in, out) layout.
    w1 = jax.random.normal(kw1, (D_in, H), dtype=jnp.float32) * 0.1
    b1 = jax.random.normal(kb1, (1, H), dtype=jnp.float32) * 0.1
    w2 = jax.random.normal(kw2, (H, D_out), dtype=jnp.float32) * 0.1

    # One-time weight prep (hoisted out of the per-call path).
    w1_p, b1_p, w2_p = prepare_params(w1, b1, w2)

    # bf16 matmul operands + approx reciprocal -> loosened tolerance vs the
    # exact-f32 reference (bf16 rel. precision ~2^-8; sigmoid compresses it).
    tol = dict(atol=2e-2, rtol=2e-2)

    # Case 1: single grid step.
    B = 8
    x = jax.random.normal(kx, (B, D_in), dtype=jnp.float32)
    y = jinyu_net_forward(x, w1_p, b1_p, w2_p)
    jax.block_until_ready(y)
    assert y.shape == (B, D_out)
    assert jnp.allclose(y, _reference(x, w1, b1, w2), **tol), "mismatch (B=8)"

    # Case 2: multi-step grid with a partial final batch block (exercises the
    # streamed / masked-boundary path).
    B2 = 20
    x2 = jax.random.normal(kx2, (B2, D_in), dtype=jnp.float32)
    y2 = jinyu_net_forward(x2, w1_p, b1_p, w2_p, block_b=8)
    jax.block_until_ready(y2)
    assert y2.shape == (B2, D_out)
    assert jnp.allclose(y2, _reference(x2, w1, b1, w2), **tol), "mismatch (B=20)"

    print("KERNEL_OK")
</pallas_src>

<mosaic_0001>
module attributes {stable_mosaic.version = 11 : i64} {
  func.func @_mlp_kernel(%arg0: i32, %arg1: memref<8x32xf32, #tpu.memory_space<vmem>>, %arg2: memref<32x128xbf16, #tpu.memory_space<vmem>>, %arg3: memref<1x128xf32, #tpu.memory_space<vmem>>, %arg4: memref<128x16xbf16, #tpu.memory_space<vmem>>, %arg5: memref<8x16xf32, #tpu.memory_space<vmem>>) attributes {dimension_semantics = [#tpu.dimension_semantics<parallel>], iteration_bounds = array<i64: 1>, scalar_prefetch = 0 : i64, scratch_operands = 0 : i64, tpu.core_type = #tpu.core_type<tc>, window_params = [{transform_indices = @transform_0, window_bounds = array<i64: 8, 32>}, {pipeline_mode = #tpu.pipeline_mode<synchronous>, transform_indices = @transform_1, window_bounds = array<i64: 32, 128>}, {pipeline_mode = #tpu.pipeline_mode<synchronous>, transform_indices = @transform_2, window_bounds = array<i64: 1, 128>}, {pipeline_mode = #tpu.pipeline_mode<synchronous>, transform_indices = @transform_3, window_bounds = array<i64: 128, 16>}, {transform_indices = @transform_4, window_bounds = array<i64: 8, 16>}]} {
    %c0 = arith.constant 0 : index
    %c0_0 = arith.constant 0 : index
    %0 = vector.load %arg1[%c0, %c0_0] : memref<8x32xf32, #tpu.memory_space<vmem>>, vector<8x32xf32>
    %1 = arith.truncf %0 : vector<8x32xf32> to vector<8x32xbf16>
    %c0_1 = arith.constant 0 : index
    %c0_2 = arith.constant 0 : index
    %2 = vector.load %arg2[%c0_1, %c0_2] : memref<32x128xbf16, #tpu.memory_space<vmem>>, vector<32x128xbf16>
    %cst = arith.constant dense<0.000000e+00> : vector<8x128xf32>
    %3 = tpu.matmul %1, %2, %cst {dimension_numbers = #tpu.dot_dimension_numbers<[1], [0], [0], [1], [0, 0, 1, 1], [], []>} : vector<8x32xbf16>, vector<32x128xbf16>, vector<8x128xf32> -> vector<8x128xf32>
    %c0_3 = arith.constant 0 : index
    %c0_4 = arith.constant 0 : index
    %4 = vector.load %arg3[%c0_3, %c0_4] : memref<1x128xf32, #tpu.memory_space<vmem>>, vector<1x128xf32>
    %5 = vector.broadcast %4 : vector<1x128xf32> to vector<8x128xf32>
    %6 = arith.addf %3, %5 : vector<8x128xf32>
    %cst_5 = arith.constant 0.000000e+00 : f32
    %7 = vector.broadcast %cst_5 : f32 to vector<8x128xf32>
    %8 = arith.maximumf %6, %7 : vector<8x128xf32>
    %c0_6 = arith.constant 0 : index
    %c0_7 = arith.constant 0 : index
    %9 = vector.load %arg4[%c0_6, %c0_7] : memref<128x16xbf16, #tpu.memory_space<vmem>>, vector<128x16xbf16>
    %cst_8 = arith.constant dense<0.000000e+00> : vector<8x16xf32>
    %10 = tpu.matmul %8, %9, %cst_8 {dimension_numbers = #tpu.dot_dimension_numbers<[1], [0], [0], [1], [0, 0, 1, 1], [], []>} : vector<8x128xf32>, vector<128x16xbf16>, vector<8x16xf32> -> vector<8x16xf32>
    %cst_9 = arith.constant 0.000000e+00 : f32
    %11 = vector.broadcast %cst_9 : f32 to vector<8x16xf32>
    %12 = arith.subf %11, %10 : vector<8x16xf32>
    %13 = math.exp %12 : vector<8x16xf32>
    %cst_10 = arith.constant 1.000000e+00 : f32
    %14 = vector.broadcast %cst_10 : f32 to vector<8x16xf32>
    %15 = arith.addf %14, %13 : vector<8x16xf32>
    %16 = tpu.reciprocal %15 {approx = true} : vector<8x16xf32> -> vector<8x16xf32>
    %c0_11 = arith.constant 0 : index
    %c0_12 = arith.constant 0 : index
    %17 = vector.load %arg5[%c0_11, %c0_12] : memref<8x16xf32, #tpu.memory_space<vmem>>, vector<8x16xf32>
    tpu.vector_store %arg5[%c0_11, %c0_12], %16 {strides = array<i32>} : memref<8x16xf32, #tpu.memory_space<vmem>>, vector<8x16xf32>,
    return
  }
  func.func @transform_0(%arg0: i32) -> (i32, i32) {
    %c0_i32 = arith.constant 0 : i32
    %c0_i32_0 = arith.constant 0 : i32
    return %arg0, %c0_i32 : i32, i32
  }
  func.func @transform_1(%arg0: i32) -> (i32, i32) {
    %c0_i32 = arith.constant 0 : i32
    %c0_i32_0 = arith.constant 0 : i32
    %c0_i32_1 = arith.constant 0 : i32
    return %c0_i32, %c0_i32_0 : i32, i32
  }
  func.func @transform_2(%arg0: i32) -> (i32, i32) {
    %c0_i32 = arith.constant 0 : i32
    %c0_i32_0 = arith.constant 0 : i32
    %c0_i32_1 = arith.constant 0 : i32
    return %c0_i32, %c0_i32_0 : i32, i32
  }
  func.func @transform_3(%arg0: i32) -> (i32, i32) {
    %c0_i32 = arith.constant 0 : i32
    %c0_i32_0 = arith.constant 0 : i32
    %c0_i32_1 = arith.constant 0 : i32
    return %c0_i32, %c0_i32_0 : i32, i32
  }
  func.func @transform_4(%arg0: i32) -> (i32, i32) {
    %c0_i32 = arith.constant 0 : i32
    %c0_i32_0 = arith.constant 0 : i32
    return %arg0, %c0_i32 : i32, i32
  }
}

</mosaic_0001>

<llo_original>
// kernel: jinyu_net_forward.1
$region0: #{jinyu_net_forward.1}
  #allocation0 [shape = 'u32[]', space=smem, size = 0x4, offset = 0x4, fixed_abs, tag = 'smem constant byte address 0x4 - core index']
  #allocation1 [shape = 'u32[72,128]{1,0:T(1,128)}', space=vmem, size = 0x9000, scoped, tag = 'internal scratch']
  %s0 = inlined_call_operand.vmem [shape: f32[8,32], index: 0, kind: input, shape index: {}]
  %s1 = inlined_call_operand.vmem [shape: bf16[32,128], index: 1, kind: input, shape index: {}]
  %s2 = inlined_call_operand.vmem [shape: f32[1,128], index: 2, kind: input, shape index: {}]
  %s3 = inlined_call_operand.vmem [shape: bf16[128,16], index: 3, kind: input, shape index: {}]
  %s4 = inlined_call_operand.hbm [shape: f32[8,16], index: 4, kind: output, shape index: {}]
  %s5 = sld [smem:[#allocation0]]
  $region26: #{jinyu_net_forward.1} parent=0
    _
  %s7 = ssub.s32 1, %s5
  %s8 = scalar_select 0, %s7, %s5
  $region1: #{jinyu_net_forward.1} parent=0
    #allocation2 [shape = 'u8[4096]{0}', space=vmem, size = 0x1000, scoped, tag = 'output window, operand 0, single buffered']
    #allocation3 [shape = 's32[1]{0}', space=sflag, size = 0x4, scoped, tag = 'scoped memory for jinyu_net_forward.1']
    %9 = vsyncpa [#allocation3], 0
    // Predicated region
    $region2: #{jinyu_net_forward.1} parent=1 // pred_check
      _
    $region3: #{jinyu_net_forward.1} parent=1 // pred_check_branch
      %11 = sbr.rel (0) target = $region5
    $region4: #{jinyu_net_forward.1} parent=1 // pred_region
      _
    $region5: #{jinyu_net_forward.1} parent=1 // pred_fallthru
      _
    // Predicated region
    $region6: #{jinyu_net_forward.1} parent=1 // pred_check
      _
    $region7: #{jinyu_net_forward.1} parent=1 // pred_check_branch
      %13 = sbr.rel (0) target = $region9
    $region8: #{jinyu_net_forward.1} parent=1 // pred_region
      _
    $region9: #{jinyu_net_forward.1} parent=1 // pred_fallthru
      _
    // Predicated region
    $region10: #{jinyu_net_forward.1} parent=1 // pred_check
      _
    $region11: #{jinyu_net_forward.1} parent=1 // pred_check_branch
      %15 = sbr.rel (0) target = $region13
    $region12: #{jinyu_net_forward.1} parent=1 // pred_region
      _
    $region13: #{jinyu_net_forward.1} parent=1 // pred_fallthru
      _
    // Predicated region
    $region14: #{jinyu_net_forward.1} parent=1 // pred_check
      _
    $region15: #{jinyu_net_forward.1} parent=1 // pred_check_branch
      %17 = sbr.rel (0) target = $region17
    $region16: #{jinyu_net_forward.1} parent=1 // pred_region
      _
    $region17: #{jinyu_net_forward.1} parent=1 // pred_fallthru
      _
    %v19 = vld [vmem:[%s0] sm:$0xff]
    %v20 = vpack.c.bf16 %v19, %v19
    %v21 = vld [vmem:[%s1] sm:$0xf]
    %v22 = vld [vmem:[%s1 + $0x4] sm:$0xf]
    %v23 = vld [vmem:[%s1 + $0x8] sm:$0xf]
    %v24 = vld [vmem:[%s1 + $0xc] sm:$0xf]
    %v25 = vld [vmem:[%s2] sm:$0x1]
    %v27 = vperm.slane %v25, 0
    %v33 = vunpack.c.l.b16 %v21
    %v34 = vunpack.c.l.b16 %v22
    %v35 = vunpack.c.l.b16 %v23
    %v36 = vunpack.c.l.b16 %v24
    %v37 = vpack.c.b16 %v34, %v33
    %v38 = vpack.c.b16 %v36, %v35
    %vm41 = vcmask 261120
    %v43 = vsel %vm41, %v20, 0
    %45 = vmatpush.bf16.msra.mxu0 0
    %46 = vmatpush.bf16.msra.mxu0 0
    %47 = vmatpush.bf16.msra.mxu0 0
    %48 = vmatpush.bf16.msra.mxu0 0
    %49 = vmatpush.bf16.msra.mxu0 0
    %50 = vmatpush.bf16.msra.mxu0 0
    %51 = vmatpush.bf16.msra.mxu0 %v38
    %52 = vmatpush.bf16.msra.mxu0 %v37
    %53 = vmatmul.bf16.gmra.mxu0 %v43
    %v54 = vpop.f32.mrf.mxu0
    %v55 = vadd.f32 %v27, %v54
    %v56 = vpop.f32.mrf.mxu0
    %57 = vdwg.mxu0
    %v58 = vmax.f32 %v55, 0.0
    %v59 = vld [vmem:[%s3] sm:$0xf]
    %v60 = vld [vmem:[%s3 + $0x4] sm:$0xf]
    %v61 = vld [vmem:[%s3 + $0x8] sm:$0xf]
    %v62 = vld [vmem:[%s3 + $0xc] sm:$0xf]
    %v63 = vld [vmem:[%s3 + $0x10] sm:$0xf]
    %v64 = vld [vmem:[%s3 + $0x14] sm:$0xf]
    %v65 = vld [vmem:[%s3 + $0x18] sm:$0xf]
    %v66 = vld [vmem:[%s3 + $0x1c] sm:$0xf]
    %v67 = vld [vmem:[%s3 + $0x20] sm:$0xf]
    %v68 = vld [vmem:[%s3 + $0x24] sm:$0xf]
    %v69 = vld [vmem:[%s3 + $0x28] sm:$0xf]
    %v70 = vld [vmem:[%s3 + $0x2c] sm:$0xf]
    %v71 = vld [vmem:[%s3 + $0x30] sm:$0xf]
    %v72 = vld [vmem:[%s3 + $0x34] sm:$0xf]
    %v73 = vld [vmem:[%s3 + $0x38] sm:$0xf]
    %v74 = vld [vmem:[%s3 + $0x3c] sm:$0xf]
    %v91 = vunpack.c.l.b16 %v59
    %v92 = vunpack.c.l.b16 %v60
    %v93 = vunpack.c.l.b16 %v61
    %v94 = vunpack.c.l.b16 %v62
    %v95 = vunpack.c.l.b16 %v63
    %v96 = vunpack.c.l.b16 %v64
    %v97 = vunpack.c.l.b16 %v65
    %v98 = vunpack.c.l.b16 %v66
    %v99 = vunpack.c.l.b16 %v67
    %v100 = vunpack.c.l.b16 %v68
    %v101 = vunpack.c.l.b16 %v69
    %v102 = vunpack.c.l.b16 %v70
    %v103 = vunpack.c.l.b16 %v71
    %v104 = vunpack.c.l.b16 %v72
    %v105 = vunpack.c.l.b16 %v73
    %v106 = vunpack.c.l.b16 %v74
    %v107 = vpack.c.b16 %v92, %v91
    %v108 = vpack.c.b16 %v94, %v93
    %v109 = vpack.c.b16 %v96, %v95
    %v110 = vpack.c.b16 %v98, %v97
    %v111 = vpack.c.b16 %v100, %v99
    %v112 = vpack.c.b16 %v102, %v101
    %v113 = vpack.c.b16 %v104, %v103
    %v114 = vpack.c.b16 %v106, %v105
    %123 = vmatpush.bf16.msra.mxu0 %v114
    %124 = vmatpush.bf16.msra.mxu0 %v113
    %125 = vmatpush.bf16.msra.mxu0 %v112
    %126 = vmatpush.bf16.msra.mxu0 %v111
    %127 = vmatpush.bf16.msra.mxu0 %v110
    %128 = vmatpush.bf16.msra.mxu0 %v109
    %129 = vmatpush.bf16.msra.mxu0 %v108
    %130 = vmatpush.bf16.msra.mxu0 %v107
    %131 = vmatmul.f32.gmra.mxu0 %v58
    %v132 = vpop.f32.mrf.mxu0
    %v133 = vadd.f32 0.0, %v132
    %134 = vdwg.mxu0
    %v135 = vsub.f32 0.0, %v133
    %v136 = vmul.f32 %v135, 1.442695
    %v137 = vpow.pop %v136
    %v138 = vadd.f32 %v137, 1.0
    %v139 = vrcp.pop %v138
    %vm140 = vcmask 130048
    %141 = vst.msk [vmem:[#allocation2] sm:$0xff] %vm140, %v139
    // Predicated region
    $region18: #{jinyu_net_forward.1} parent=1 // pred_check
      _
    $region19: #{jinyu_net_forward.1} parent=1 // pred_check_branch
      %143 = sbr.rel (0) target = $region21
    $region20: #{jinyu_net_forward.1} parent=1 // pred_region
      %145 = vsyncadd [#allocation3], 0
      %s147 = sshll.u32 [#allocation2], 4
      %s148 = int_to_ptr.vmem [resolvable:$true] %s147
      %s149 = sshll.u32 %s4, 4
      %s150 = int_to_ptr.hbm [resolvable:$true] %s149
      %152 = dma.vmem_to_hbm [thread:$0]  %s148, 128, %s150, [#allocation3]
    $region21: #{jinyu_net_forward.1} parent=1 // pred_fallthru
      _
    // Predicated region
    $region22: #{jinyu_net_forward.1} parent=1 // pred_check
      _
    $region23: #{jinyu_net_forward.1} parent=1 // pred_check_branch
      %154 = sbr.rel (0) target = $region25
    $region24: #{jinyu_net_forward.1} parent=1 // pred_region
      %156 = dma.done [#allocation3], 128
    $region25: #{jinyu_net_forward.1} parent=1 // pred_fallthru
      _
    %157 = vsyncpa [#allocation3], 1

</llo_original>
